<compile_context>
chip_gen: v5e
topology: v5e:2x2
jax: 0.10.0
libtpu: 0.0.40
codegen_flags: <defaults>
</compile_context>

<pallas_src>
import jax
import jax.numpy as jnp
from jax.experimental import pallas as pl
from jax.experimental.pallas import tpu as pltpu


# ----------------------------- small helpers --------------------------------

def _round_up(v, m):
    return ((v + m - 1) // m) * m


def _cdiv(a, b):
    return -(-a // b)


def _pad_to(a, shape):
    return jnp.pad(a, [(0, t - s) for s, t in zip(a.shape, shape)])


def _tpu_env():
    """(physical VMEM bytes per core, TensorCores per chip, MXU M dim)."""
    vmem = 64 << 20                          # conservative default (v7x-sized)
    try:
        vmem = int(pltpu.get_tpu_info().vmem_capacity_bytes)
    except Exception:
        pass
    kind = ""
    try:
        kind = jax.devices()[0].device_kind.lower()
    except Exception:
        pass
    n_cores = 2 if "v7" in kind else 1                        # v7x: 2 TCs/chip
    mxu_m = 128 if ("v5 lite" in kind or "v5e" in kind) else 256
    return vmem, n_cores, mxu_m


def _pick_tb(B, Np, H1p, H2p, weight_vmem_bytes, budget_bytes, n_cores, mxu_m):
    """Batch-row tile: multiple of 8, fits the *corrected* VMEM budget
    (double-buffered x/out f32 tiles + bf16 casts + f32 h1/h2 intermediates),
    capped at 1024 rows (HBM roofline saturates by then), rounded to the MXU M
    dim when large, and small enough on multi-TC chips that each core gets at
    least two pipelined grid steps."""
    per_row = 18 * Np + 6 * (H1p + H2p)            # VMEM bytes per batch row
    avail = budget_bytes - weight_vmem_bytes - (2 << 20)   # Mosaic slack
    cap = (max(avail, 8 * per_row) // per_row) // 8 * 8
    cap = max(8, min(1024, cap))
    if B <= 8:
        return 8
    tb = min(cap, _round_up(B, 8))
    if n_cores > 1 and B > 8 * 2 * n_cores:
        # >= 2 steps per core: DMAs double-buffer and both cores stay busy.
        tb = min(tb, _round_up(_cdiv(B, 2 * n_cores), 8))
    if tb >= mxu_m:
        tb = (tb // mxu_m) * mxu_m                 # feed full MXU M tiles
    return max(8, tb)


# -------------------------------- kernels ------------------------------------

def _converter_kernel(x_ref, w1_ref, b1_ref, w2_ref, b2_ref, w3_ref, b3_ref,
                      o_ref):
    """Whole-weight-resident path: W1/W2 live in VMEM for the full grid."""
    x = x_ref[...]                                                   # [TB, Np] f32
    mm = w1_ref.dtype                                                # bf16 (or f32)

    # Layer 1: MXU matmul (bf16 in, f32 acc) + f32 bias/ReLU on the VPU.
    h1 = jnp.dot(x.astype(mm), w1_ref[...], preferred_element_type=jnp.float32)
    h1 = jnp.maximum(h1 + b1_ref[...], 0.0)
    # TODO(synk): nn.Dropout is identity in eval mode; omitted.

    # Layer 2.
    h2 = jnp.dot(h1.astype(w2_ref.dtype), w2_ref[...],
                 preferred_element_type=jnp.float32)
    h2 = jnp.maximum(h2 + b2_ref[...], 0.0)

    # Layer 3 (output width 1): VPU multiply + XLU cross-lane reduce instead of
    # a 1-lane MXU matmul; b3 is an SMEM scalar.
    rate = jnp.sum(h2 * w3_ref[...], axis=-1, keepdims=True) + b3_ref[0]

    o_ref[...] = (x * rate).astype(o_ref.dtype)


def _make_w1_stream_kernel(nk, tk):
    """Large-N path: W1 stays in HBM and is streamed in (tk, H1p) row chunks
    with a manual double buffer while layer 1 accumulates in f32 VMEM scratch."""

    def kernel(x_ref, w1_hbm, b1_ref, w2_ref, b2_ref, w3_ref, b3_ref, o_ref,
               w1_buf, sem, h1_acc):
        def start(j, slot):
            pltpu.make_async_copy(w1_hbm.at[j * tk:(j + 1) * tk],
                                  w1_buf.at[slot], sem.at[slot]).start()

        def wait(j, slot):
            pltpu.make_async_copy(w1_hbm.at[j * tk:(j + 1) * tk],
                                  w1_buf.at[slot], sem.at[slot]).wait()

        start(0, 0)
        h1_acc[...] = jnp.zeros_like(h1_acc)
        for j in range(nk):                       # static unroll; nk is modest
            slot = j % 2
            wait(j, slot)
            if j + 1 < nk:
                start(j + 1, 1 - slot)            # prefetch next chunk
            xk = x_ref[:, j * tk:(j + 1) * tk].astype(w1_buf.dtype)
            h1_acc[...] += jnp.dot(xk, w1_buf[slot],
                                   preferred_element_type=jnp.float32)

        h1 = jnp.maximum(h1_acc[...] + b1_ref[...], 0.0)
        h2 = jnp.dot(h1.astype(w2_ref.dtype), w2_ref[...],
                     preferred_element_type=jnp.float32)
        h2 = jnp.maximum(h2 + b2_ref[...], 0.0)
        rate = jnp.sum(h2 * w3_ref[...], axis=-1, keepdims=True) + b3_ref[0]
        o_ref[...] = (x_ref[...] * rate).astype(o_ref.dtype)

    return kernel


# -------------------------------- wrapper -------------------------------------

def num_based_mlp_converter(x, params, *, tb=None, matmul_dtype=jnp.bfloat16,
                            lane=128, vmem_budget_bytes=None,
                            force_stream_w1=False, stream_tk=None):
    """x: [B, N] float32.  params: dict of w1,b1,w2,b2,w3,b3 (all float32)."""
    B, N = x.shape
    w1, b1 = params["w1"], params["b1"]
    w2, b2 = params["w2"], params["b2"]
    w3, b3 = params["w3"], params["b3"]
    H1, H2 = w1.shape[1], w2.shape[1]

    phys_vmem, n_cores, mxu_m = _tpu_env()
    if vmem_budget_bytes is None:
        # Generation-aware: ~96 MiB usable on v5e/v6e (128 MiB physical),
        # ~48 MiB on v7x (64 MiB physical per TensorCore).
        vmem_budget_bytes = max(32 << 20, phys_vmem * 3 // 4)

    # Lane-align every dim touching the MXU or the streamed x/out tiles.
    # Zero padding is numerically exact (padded x cols are 0, padded W rows/cols
    # are 0, ReLU(0)=0) and keeps output stores unmasked / lane-dense.
    Np, H1p, H2p = _round_up(N, lane), _round_up(H1, lane), _round_up(H2, lane)

    w1p = _pad_to(w1, (Np, H1p)).astype(matmul_dtype)
    b1p = _pad_to(b1.reshape(1, H1), (1, H1p)).astype(jnp.float32)
    w2p = _pad_to(w2, (H1p, H2p)).astype(matmul_dtype)
    b2p = _pad_to(b2.reshape(1, H2), (1, H2p)).astype(jnp.float32)
    w3row = _pad_to(w3.reshape(1, H2), (1, H2p)).astype(jnp.float32)  # VPU path
    b3s = b3.reshape(1).astype(jnp.float32)                           # SMEM scalar

    itemsize = jnp.dtype(matmul_dtype).itemsize
    w1_bytes = Np * H1p * itemsize
    small_w_bytes = H1p * H2p * itemsize + 4 * (H1p + 2 * H2p)   # W2 + b1/b2/w3

    # Large N: W1 residency would eat the activation budget -> stream it from HBM.
    stream_w1 = force_stream_w1 or (
        w1_bytes + small_w_bytes > vmem_budget_bytes - (8 << 20))
    # TODO(synk): for extreme N also stream W2, and/or add an fp8 (v7x) / int8
    # (v5e/v6e) weight path with per-output-channel scales.

    tk = None
    if stream_w1:
        if stream_tk is not None:
            tk = stream_tk
        else:
            for cand in (512, 256, 128):
                if Np % cand == 0 and 2 * cand * H1p * itemsize <= vmem_budget_bytes // 4:
                    tk = cand
                    break
            tk = tk or 128
        assert Np % tk == 0 and tk % 128 == 0, (Np, tk)

    weight_vmem = small_w_bytes + (2 * tk * H1p * itemsize if stream_w1
                                   else w1_bytes)
    if tb is None:
        tb = _pick_tb(B, Np, H1p, H2p, weight_vmem, vmem_budget_bytes,
                      n_cores, mxu_m)
    assert tb % 8 == 0, tb

    # Pad the batch so the grid always has whole tiles (and, on multi-TC chips,
    # an even step count); padded rows are numerically inert and sliced off.
    Bp = _round_up(B, tb)
    steps = Bp // tb
    if n_cores > 1 and steps > 1 and steps % 2 == 1:
        Bp += tb
        steps += 1

    xp = x.astype(jnp.float32)
    if (Bp, Np) != (B, N):
        xp = jnp.pad(xp, ((0, Bp - B), (0, Np - N)))

    grid = (steps,)

    const = lambda i: (0, 0)
    # Grid-invariant operands: single-buffered (halves their VMEM footprint).
    wspec = lambda shape: pl.BlockSpec(shape, const,
                                       pipeline_mode=pl.Buffered(buffer_count=1))
    x_spec = pl.BlockSpec((tb, Np), lambda i: (i, 0))
    o_spec = pl.BlockSpec((tb, Np), lambda i: (i, 0))
    smem_spec = pl.BlockSpec(memory_space=pltpu.MemorySpace.SMEM)

    if stream_w1:
        kernel = _make_w1_stream_kernel(Np // tk, tk)
        w1_spec = pl.BlockSpec(memory_space=pl.ANY)            # stays in HBM
        scratch = [pltpu.VMEM((2, tk, H1p), matmul_dtype),     # W1 double buffer
                   pltpu.SemaphoreType.DMA((2,)),
                   pltpu.VMEM((tb, H1p), jnp.float32)]         # f32 accumulator
    else:
        kernel = _converter_kernel
        w1_spec = wspec((Np, H1p))
        scratch = []

    per_row = 18 * Np + 6 * (H1p + H2p)
    vmem_est = weight_vmem + tb * per_row + (tb * H1p * 4 if stream_w1 else 0)
    vmem_limit = int(min(phys_vmem * 7 // 8, max(32 << 20, vmem_est * 5 // 4)))

    flops = 2 * Bp * (Np * H1p + H1p * H2p) + 3 * Bp * H2p + 2 * Bp * Np
    bytes_accessed = (2 * Bp * Np * 4 + small_w_bytes
                      + w1_bytes * (steps if stream_w1 else 1))

    out = pl.pallas_call(
        kernel,
        out_shape=jax.ShapeDtypeStruct((Bp, Np), x.dtype),
        grid_spec=pltpu.PrefetchScalarGridSpec(
            num_scalar_prefetch=0,
            grid=grid,
            in_specs=[
                x_spec,                 # x tile (pipelined, lane-dense)
                w1_spec,                # W1 (resident bf16, or HBM-streamed)
                wspec((1, H1p)),        # b1  (f32)
                wspec((H1p, H2p)),      # W2  (bf16)
                wspec((1, H2p)),        # b2  (f32)
                wspec((1, H2p)),        # W3 as a row (f32, VPU path)
                smem_spec,              # b3 scalar in SMEM
            ],
            out_specs=o_spec,
            scratch_shapes=scratch,
        ),
        compiler_params=pltpu.CompilerParams(
            dimension_semantics=("parallel",),
            vmem_limit_bytes=vmem_limit),
        cost_estimate=pl.CostEstimate(flops=int(flops), transcendentals=0,
                                      bytes_accessed=int(bytes_accessed)),
    )(xp, w1p, b1p, w2p, b2p, w3row, b3s)

    if (Bp, Np) != (B, N):
        out = out[:B, :N]
    return out


# ----------------------------- reference & init -------------------------------

def init_params(key, n, layers=(1.5, 0.5)):
    """Deterministic init matching NumMLP's layer-size arithmetic."""
    sizes = [n] + [x if isinstance(x, int) else int(round(x * n)) for x in layers]
    sizes = sizes + [1]  # final Linear(layers[-1], 1)
    ks = jax.random.split(key, 2 * (len(sizes) - 1))
    params = {}
    for idx, (fan_in, fan_out) in enumerate(zip(sizes[:-1], sizes[1:]), start=1):
        bound = 1.0 / jnp.sqrt(jnp.float32(fan_in))
        kw, kb = ks[2 * (idx - 1)], ks[2 * (idx - 1) + 1]
        params[f"w{idx}"] = jax.random.uniform(
            kw, (fan_in, fan_out), jnp.float32, -bound, bound)
        params[f"b{idx}"] = jax.random.uniform(
            kb, (1, fan_out), jnp.float32, -bound, bound)
    return params


def reference(x, p):
    h1 = jnp.maximum(x @ p["w1"] + p["b1"], 0.0)
    h2 = jnp.maximum(h1 @ p["w2"] + p["b2"], 0.0)
    rate = h2 @ p["w3"] + p["b3"]
    return x * rate


if __name__ == "__main__":
    root = jax.random.PRNGKey(0)

    cases = [
        # (name, B, N, extra kwargs)
        ("resident",  64, 128, {}),                # n=128 -> hidden 192/64 (padded)
        ("padded",    44,  96, {}),                # exercises B- and N-padding
        ("stream_w1", 32, 256, dict(force_stream_w1=True, stream_tk=128)),
    ]
    for idx, (name, B, N, kw) in enumerate(cases):
        kx, kp = jax.random.split(jax.random.fold_in(root, idx))
        x = jax.random.normal(kx, (B, N), jnp.float32)
        params = init_params(kp, N, layers=(1.5, 0.5))

        out = jax.block_until_ready(num_based_mlp_converter(x, params, **kw))
        ref = reference(x, params)

        assert out.shape == (B, N), (name, out.shape)
        # bf16 MXU inputs with f32 accumulation -> loosened tolerance vs f32 ref.
        err = float(jnp.max(jnp.abs(out - ref)))
        assert jnp.allclose(out, ref, atol=5e-2, rtol=5e-2), (name, err)

    print("KERNEL_OK")
</pallas_src>

<mosaic_0001>
module attributes {stable_mosaic.version = 11 : i64} {
  func.func @_converter_kernel(%arg0: i32, %arg1: memref<64x128xf32, #tpu.memory_space<vmem>>, %arg2: memref<128x256xbf16, #tpu.memory_space<vmem>>, %arg3: memref<1x256xf32, #tpu.memory_space<vmem>>, %arg4: memref<256x128xbf16, #tpu.memory_space<vmem>>, %arg5: memref<1x128xf32, #tpu.memory_space<vmem>>, %arg6: memref<1x128xf32, #tpu.memory_space<vmem>>, %arg7: memref<1xf32, #tpu.memory_space<smem>>, %arg8: memref<64x128xf32, #tpu.memory_space<vmem>>) attributes {dimension_semantics = [#tpu.dimension_semantics<parallel>], iteration_bounds = array<i64: 1>, scalar_prefetch = 0 : i64, scratch_operands = 0 : i64, tpu.core_type = #tpu.core_type<tc>, window_params = [{transform_indices = @transform_0, window_bounds = array<i64: 64, 128>}, {pipeline_mode = #tpu.pipeline_mode<synchronous>, transform_indices = @transform_1, window_bounds = array<i64: 128, 256>}, {pipeline_mode = #tpu.pipeline_mode<synchronous>, transform_indices = @transform_2, window_bounds = array<i64: 1, 256>}, {pipeline_mode = #tpu.pipeline_mode<synchronous>, transform_indices = @transform_3, window_bounds = array<i64: 256, 128>}, {pipeline_mode = #tpu.pipeline_mode<synchronous>, transform_indices = @transform_4, window_bounds = array<i64: 1, 128>}, {pipeline_mode = #tpu.pipeline_mode<synchronous>, transform_indices = @transform_5, window_bounds = array<i64: 1, 128>}, {transform_indices = @transform_6, window_bounds = array<i64: 1>}, {transform_indices = @transform_7, window_bounds = array<i64: 64, 128>}]} {
    %c0 = arith.constant 0 : index
    %c0_0 = arith.constant 0 : index
    %0 = vector.load %arg1[%c0, %c0_0] : memref<64x128xf32, #tpu.memory_space<vmem>>, vector<64x128xf32>
    %1 = arith.truncf %0 : vector<64x128xf32> to vector<64x128xbf16>
    %c0_1 = arith.constant 0 : index
    %c0_2 = arith.constant 0 : index
    %2 = vector.load %arg2[%c0_1, %c0_2] : memref<128x256xbf16, #tpu.memory_space<vmem>>, vector<128x256xbf16>
    %cst = arith.constant dense<0.000000e+00> : vector<64x256xf32>
    %3 = tpu.matmul %1, %2, %cst {dimension_numbers = #tpu.dot_dimension_numbers<[1], [0], [0], [1], [0, 0, 1, 1], [], []>} : vector<64x128xbf16>, vector<128x256xbf16>, vector<64x256xf32> -> vector<64x256xf32>
    %c0_3 = arith.constant 0 : index
    %c0_4 = arith.constant 0 : index
    %4 = vector.load %arg3[%c0_3, %c0_4] : memref<1x256xf32, #tpu.memory_space<vmem>>, vector<1x256xf32>
    %5 = vector.broadcast %4 : vector<1x256xf32> to vector<64x256xf32>
    %6 = arith.addf %3, %5 : vector<64x256xf32>
    %cst_5 = arith.constant 0.000000e+00 : f32
    %7 = vector.broadcast %cst_5 : f32 to vector<64x256xf32>
    %8 = arith.maximumf %6, %7 : vector<64x256xf32>
    %9 = arith.truncf %8 : vector<64x256xf32> to vector<64x256xbf16>
    %c0_6 = arith.constant 0 : index
    %c0_7 = arith.constant 0 : index
    %10 = vector.load %arg4[%c0_6, %c0_7] : memref<256x128xbf16, #tpu.memory_space<vmem>>, vector<256x128xbf16>
    %cst_8 = arith.constant dense<0.000000e+00> : vector<64x128xf32>
    %11 = tpu.matmul %9, %10, %cst_8 {dimension_numbers = #tpu.dot_dimension_numbers<[1], [0], [0], [1], [0, 0, 1, 1], [], []>} : vector<64x256xbf16>, vector<256x128xbf16>, vector<64x128xf32> -> vector<64x128xf32>
    %c0_9 = arith.constant 0 : index
    %c0_10 = arith.constant 0 : index
    %12 = vector.load %arg5[%c0_9, %c0_10] : memref<1x128xf32, #tpu.memory_space<vmem>>, vector<1x128xf32>
    %13 = vector.broadcast %12 : vector<1x128xf32> to vector<64x128xf32>
    %14 = arith.addf %11, %13 : vector<64x128xf32>
    %cst_11 = arith.constant 0.000000e+00 : f32
    %15 = vector.broadcast %cst_11 : f32 to vector<64x128xf32>
    %16 = arith.maximumf %14, %15 : vector<64x128xf32>
    %c0_12 = arith.constant 0 : index
    %c0_13 = arith.constant 0 : index
    %17 = vector.load %arg6[%c0_12, %c0_13] : memref<1x128xf32, #tpu.memory_space<vmem>>, vector<1x128xf32>
    %18 = vector.broadcast %17 : vector<1x128xf32> to vector<64x128xf32>
    %19 = arith.mulf %16, %18 : vector<64x128xf32>
    %cst_14 = arith.constant dense<0.000000e+00> : vector<64xf32>
    %20 = vector.multi_reduction <add>, %19, %cst_14 [1] : vector<64x128xf32> to vector<64xf32>
    %21 = vector.shape_cast %20 : vector<64xf32> to vector<64x1xf32>
    %c0_15 = arith.constant 0 : index
    %22 = memref.load %arg7[%c0_15] : memref<1xf32, #tpu.memory_space<smem>>
    %23 = vector.broadcast %22 : f32 to vector<64x1xf32>
    %24 = arith.addf %21, %23 : vector<64x1xf32>
    %25 = vector.broadcast %24 : vector<64x1xf32> to vector<64x128xf32>
    %26 = arith.mulf %0, %25 : vector<64x128xf32>
    %c0_16 = arith.constant 0 : index
    %c0_17 = arith.constant 0 : index
    %27 = vector.load %arg8[%c0_16, %c0_17] : memref<64x128xf32, #tpu.memory_space<vmem>>, vector<64x128xf32>
    tpu.vector_store %arg8[%c0_16, %c0_17], %26 {strides = array<i32>} : memref<64x128xf32, #tpu.memory_space<vmem>>, vector<64x128xf32>,
    return
  }
  func.func @transform_0(%arg0: i32) -> (i32, i32) {
    %c0_i32 = arith.constant 0 : i32
    %c0_i32_0 = arith.constant 0 : i32
    return %arg0, %c0_i32 : i32, i32
  }
  func.func @transform_1(%arg0: i32) -> (i32, i32) {
    %c0_i32 = arith.constant 0 : i32
    %c0_i32_0 = arith.constant 0 : i32
    %c0_i32_1 = arith.constant 0 : i32
    return %c0_i32, %c0_i32_0 : i32, i32
  }
  func.func @transform_2(%arg0: i32) -> (i32, i32) {
    %c0_i32 = arith.constant 0 : i32
    %c0_i32_0 = arith.constant 0 : i32
    %c0_i32_1 = arith.constant 0 : i32
    return %c0_i32, %c0_i32_0 : i32, i32
  }
  func.func @transform_3(%arg0: i32) -> (i32, i32) {
    %c0_i32 = arith.constant 0 : i32
    %c0_i32_0 = arith.constant 0 : i32
    %c0_i32_1 = arith.constant 0 : i32
    return %c0_i32, %c0_i32_0 : i32, i32
  }
  func.func @transform_4(%arg0: i32) -> (i32, i32) {
    %c0_i32 = arith.constant 0 : i32
    %c0_i32_0 = arith.constant 0 : i32
    %c0_i32_1 = arith.constant 0 : i32
    return %c0_i32, %c0_i32_0 : i32, i32
  }
  func.func @transform_5(%arg0: i32) -> (i32, i32) {
    %c0_i32 = arith.constant 0 : i32
    %c0_i32_0 = arith.constant 0 : i32
    %c0_i32_1 = arith.constant 0 : i32
    return %c0_i32, %c0_i32_0 : i32, i32
  }
  func.func @transform_6(%arg0: i32) -> i32 {
    %c0_i32 = arith.constant 0 : i32
    %c0_i32_0 = arith.constant 0 : i32
    return %c0_i32 : i32
  }
  func.func @transform_7(%arg0: i32) -> (i32, i32) {
    %c0_i32 = arith.constant 0 : i32
    %c0_i32_0 = arith.constant 0 : i32
    return %arg0, %c0_i32 : i32, i32
  }
}

</mosaic_0001>

<llo_original>
// kernel: tpu_custom_call.1
$region0: #{tpu_custom_call.1}
  #allocation0 [shape = 'u32[]', space=smem, size = 0x4, offset = 0x4, fixed_abs, tag = 'smem constant byte address 0x4 - core index']
  #allocation1 [shape = 'u32[72,128]{1,0:T(1,128)}', space=vmem, size = 0x9000, scoped, tag = 'internal scratch']
  #allocation2 [shape = 'f32[1]{0:T(128)S(6)}', space=smem, size = 0x200, scoped, tag = 'scoped memory for tpu_custom_call.1']
  %s0 = inlined_call_operand.hbm [shape: f32[64,128], index: 0, kind: input, shape index: {}]
  %s1 = inlined_call_operand.hbm [shape: bf16[128,256], index: 1, kind: input, shape index: {}]
  %s2 = inlined_call_operand.vmem [shape: f32[1,256], index: 2, kind: input, shape index: {}]
  %s3 = inlined_call_operand.hbm [shape: bf16[256,128], index: 3, kind: input, shape index: {}]
  %s4 = inlined_call_operand.vmem [shape: f32[1,128], index: 4, kind: input, shape index: {}]
  %s5 = inlined_call_operand.vmem [shape: f32[1,128], index: 5, kind: input, shape index: {}]
  %s6 = inlined_call_operand.<no memory space> [shape: f32[1], index: 6, kind: input, shape index: {}]
  %s7 = inlined_call_operand.hbm [shape: f32[64,128], index: 7, kind: output, shape index: {}]
  %s8 = sld [smem:[#allocation0]]
  $region50: #{tpu_custom_call.1} parent=0
    _
  %s10 = ssub.s32 1, %s8
  %s11 = scalar_select 0, %s10, %s8
  %12 = sst [smem:[#allocation2]] %s6
  $region1: #{tpu_custom_call.1} parent=0
    #allocation3 [shape = 'u8[32768]{0}', space=vmem, size = 0x8000, scoped, tag = 'input window, operand 0, single buffered']
    #allocation4 [shape = 's32[1]{0}', space=sflag, size = 0x4, scoped, tag = 'scoped memory for tpu_custom_call.1']
    #allocation5 [shape = 's32[1]{0}', space=sflag, size = 0x4, scoped, tag = 'scoped memory for tpu_custom_call.1']
    #allocation6 [shape = 'u8[65536]{0}', space=vmem, size = 0x10000, scoped, tag = 'input window, operand 1, single buffered']
    #allocation7 [shape = 's32[1]{0}', space=sflag, size = 0x4, scoped, tag = 'scoped memory for tpu_custom_call.1']
    #allocation8 [shape = 'u8[65536]{0}', space=vmem, size = 0x10000, scoped, tag = 'input window, operand 3, single buffered']
    #allocation9 [shape = 'u8[32768]{0}', space=vmem, size = 0x8000, scoped, tag = 'output window, operand 0, single buffered']
    %13 = vsyncpa [#allocation4], 0
    %14 = vsyncpa [#allocation7], 0
    %15 = vsyncpa [#allocation5], 0
    // Predicated region
    $region2: #{tpu_custom_call.1} parent=1 // pred_check
      _
    $region3: #{tpu_custom_call.1} parent=1 // pred_check_branch
      %17 = sbr.rel (0) target = $region5
    $region4: #{tpu_custom_call.1} parent=1 // pred_region
      %19 = vsyncadd [#allocation4], 0
      %s20 = sshll.u32 %s0, 4
      %s21 = int_to_ptr.hbm [resolvable:$true] %s20
      %s22 = sshll.u32 [#allocation3], 4
      %s23 = int_to_ptr.vmem [resolvable:$true] %s22
      %28 = dma.hbm_to_vmem [thread:$0]  %s21, 1024, %s23, [#allocation4], 128, 128, 8
    $region5: #{tpu_custom_call.1} parent=1 // pred_fallthru
      _
    // Predicated region
    $region6: #{tpu_custom_call.1} parent=1 // pred_check
      _
    $region7: #{tpu_custom_call.1} parent=1 // pred_check_branch
      %30 = sbr.rel (0) target = $region9
    $region8: #{tpu_custom_call.1} parent=1 // pred_region
      %32 = vsyncadd [#allocation7], 0
      %s33 = sshll.u32 %s1, 4
      %s34 = int_to_ptr.hbm [resolvable:$true] %s33
      %s35 = sshll.u32 [#allocation6], 4
      %s36 = int_to_ptr.vmem [resolvable:$true] %s35
      %41 = dma.hbm_to_vmem [thread:$0]  %s34, 2048, %s36, [#allocation7], 128, 128, 8
    $region9: #{tpu_custom_call.1} parent=1 // pred_fallthru
      _
    // Predicated region
    $region10: #{tpu_custom_call.1} parent=1 // pred_check
      _
    $region11: #{tpu_custom_call.1} parent=1 // pred_check_branch
      %43 = sbr.rel (0) target = $region13
    $region12: #{tpu_custom_call.1} parent=1 // pred_region
      _
    $region13: #{tpu_custom_call.1} parent=1 // pred_fallthru
      _
    // Predicated region
    $region14: #{tpu_custom_call.1} parent=1 // pred_check
      _
    $region15: #{tpu_custom_call.1} parent=1 // pred_check_branch
      %45 = sbr.rel (0) target = $region17
    $region16: #{tpu_custom_call.1} parent=1 // pred_region
      %47 = vsyncadd [#allocation7], 0
      %s48 = sshll.u32 %s3, 4
      %s49 = int_to_ptr.hbm [resolvable:$true] %s48
      %s50 = sshll.u32 [#allocation8], 4
      %s51 = int_to_ptr.vmem [resolvable:$true] %s50
      %56 = dma.hbm_to_vmem [thread:$0]  %s49, 2048, %s51, [#allocation7], 64, 64, 4
    $region17: #{tpu_custom_call.1} parent=1 // pred_fallthru
      _
    // Predicated region
    $region18: #{tpu_custom_call.1} parent=1 // pred_check
      _
    $region19: #{tpu_custom_call.1} parent=1 // pred_check_branch
      %58 = sbr.rel (0) target = $region21
    $region20: #{tpu_custom_call.1} parent=1 // pred_region
      _
    $region21: #{tpu_custom_call.1} parent=1 // pred_fallthru
      _
    // Predicated region
    $region22: #{tpu_custom_call.1} parent=1 // pred_check
      _
    $region23: #{tpu_custom_call.1} parent=1 // pred_check_branch
      %60 = sbr.rel (0) target = $region25
    $region24: #{tpu_custom_call.1} parent=1 // pred_region
      _
    $region25: #{tpu_custom_call.1} parent=1 // pred_fallthru
      _
    // Predicated region
    $region26: #{tpu_custom_call.1} parent=1 // pred_check
      _
    $region27: #{tpu_custom_call.1} parent=1 // pred_check_branch
      %62 = sbr.rel (0) target = $region29
    $region28: #{tpu_custom_call.1} parent=1 // pred_region
      _
    $region29: #{tpu_custom_call.1} parent=1 // pred_fallthru
      _
    // Predicated region
    $region30: #{tpu_custom_call.1} parent=1 // pred_check
      _
    $region31: #{tpu_custom_call.1} parent=1 // pred_check_branch
      %64 = sbr.rel (0) target = $region33
    $region32: #{tpu_custom_call.1} parent=1 // pred_region
      %66 = dma.done [#allocation4], 1024
    $region33: #{tpu_custom_call.1} parent=1 // pred_fallthru
      _
    // Predicated region
    $region34: #{tpu_custom_call.1} parent=1 // pred_check
      _
    $region35: #{tpu_custom_call.1} parent=1 // pred_check_branch
      %68 = sbr.rel (0) target = $region37
    $region36: #{tpu_custom_call.1} parent=1 // pred_region
      %70 = dma.done [#allocation7], 2048
    $region37: #{tpu_custom_call.1} parent=1 // pred_fallthru
      _
    // Predicated region
    $region38: #{tpu_custom_call.1} parent=1 // pred_check
      _
    $region39: #{tpu_custom_call.1} parent=1 // pred_check_branch
      %72 = sbr.rel (0) target = $region41
    $region40: #{tpu_custom_call.1} parent=1 // pred_region
      %74 = dma.done [#allocation7], 2048
    $region41: #{tpu_custom_call.1} parent=1 // pred_fallthru
      _
    %v75 = vld [vmem:[#allocation3] sm:$0xff]
    %v76 = vld [vmem:[#allocation3 + $0x8] sm:$0xff]
    %v77 = vld [vmem:[#allocation3 + $0x10] sm:$0xff]
    %v78 = vld [vmem:[#allocation3 + $0x18] sm:$0xff]
    %v79 = vld [vmem:[#allocation3 + $0x20] sm:$0xff]
    %v80 = vld [vmem:[#allocation3 + $0x28] sm:$0xff]
    %v81 = vld [vmem:[#allocation3 + $0x30] sm:$0xff]
    %v82 = vld [vmem:[#allocation3 + $0x38] sm:$0xff]
    %v83 = vpack.c.bf16 %v76, %v75
    %v84 = vpack.c.bf16 %v78, %v77
    %v85 = vpack.c.bf16 %v80, %v79
    %v86 = vpack.c.bf16 %v82, %v81
    %v87 = vld [vmem:[#allocation6] sm:$0xff]
    %v88 = vld [vmem:[#allocation6 + $0x8] sm:$0xff]
    %v89 = vld [vmem:[#allocation6 + $0x10] sm:$0xff]
    %v90 = vld [vmem:[#allocation6 + $0x18] sm:$0xff]
    %v91 = vld [vmem:[#allocation6 + $0x20] sm:$0xff]
    %v92 = vld [vmem:[#allocation6 + $0x28] sm:$0xff]
    %v93 = vld [vmem:[#allocation6 + $0x30] sm:$0xff]
    %v94 = vld [vmem:[#allocation6 + $0x38] sm:$0xff]
    %v95 = vld [vmem:[#allocation6 + $0x40] sm:$0xff]
    %v96 = vld [vmem:[#allocation6 + $0x48] sm:$0xff]
    %v97 = vld [vmem:[#allocation6 + $0x50] sm:$0xff]
    %v98 = vld [vmem:[#allocation6 + $0x58] sm:$0xff]
    %v99 = vld [vmem:[#allocation6 + $0x60] sm:$0xff]
    %v100 = vld [vmem:[#allocation6 + $0x68] sm:$0xff]
    %v101 = vld [vmem:[#allocation6 + $0x70] sm:$0xff]
    %v102 = vld [vmem:[#allocation6 + $0x78] sm:$0xff]
    %v103 = vld [vmem:[%s2] sm:$0x3]
    %v105 = vperm.slane %v103, 0
    %v106 = vperm.slane %v103, 1
    %v125 = vunpack.c.l.b16 %v87
    %v126 = vunpack.c.h.b16 %v87
    %v127 = vunpack.c.l.b16 %v88
    %v128 = vunpack.c.h.b16 %v88
    %v129 = vunpack.c.l.b16 %v89
    %v130 = vunpack.c.h.b16 %v89
    %v131 = vunpack.c.l.b16 %v90
    %v132 = vunpack.c.h.b16 %v90
    %v133 = vunpack.c.l.b16 %v91
    %v134 = vunpack.c.h.b16 %v91
    %v135 = vunpack.c.l.b16 %v92
    %v136 = vunpack.c.h.b16 %v92
    %v137 = vunpack.c.l.b16 %v93
    %v138 = vunpack.c.h.b16 %v93
    %v139 = vunpack.c.l.b16 %v94
    %v140 = vunpack.c.h.b16 %v94
    %v141 = vunpack.c.l.b16 %v95
    %v142 = vunpack.c.h.b16 %v95
    %v143 = vunpack.c.l.b16 %v96
    %v144 = vunpack.c.h.b16 %v96
    %v145 = vunpack.c.l.b16 %v97
    %v146 = vunpack.c.h.b16 %v97
    %v147 = vunpack.c.l.b16 %v98
    %v148 = vunpack.c.h.b16 %v98
    %v149 = vunpack.c.l.b16 %v99
    %v150 = vunpack.c.h.b16 %v99
    %v151 = vunpack.c.l.b16 %v100
    %v152 = vunpack.c.h.b16 %v100
    %v153 = vunpack.c.l.b16 %v101
    %v154 = vunpack.c.h.b16 %v101
    %v155 = vunpack.c.l.b16 %v102
    %v156 = vunpack.c.h.b16 %v102
    %v157 = vpack.c.b16 %v127, %v125
    %v158 = vpack.c.b16 %v128, %v126
    %v159 = vpack.c.b16 %v131, %v129
    %v160 = vpack.c.b16 %v132, %v130
    %v161 = vpack.c.b16 %v135, %v133
    %v162 = vpack.c.b16 %v136, %v134
    %v163 = vpack.c.b16 %v139, %v137
    %v164 = vpack.c.b16 %v140, %v138
    %v165 = vpack.c.b16 %v143, %v141
    %v166 = vpack.c.b16 %v144, %v142
    %v167 = vpack.c.b16 %v147, %v145
    %v168 = vpack.c.b16 %v148, %v146
    %v169 = vpack.c.b16 %v151, %v149
    %v170 = vpack.c.b16 %v152, %v150
    %v171 = vpack.c.b16 %v155, %v153
    %v172 = vpack.c.b16 %v156, %v154
    %189 = vmatpush.bf16.msra.mxu0 %v171
    %190 = vmatpush.bf16.msra.mxu0 %v169
    %191 = vmatpush.bf16.msra.mxu0 %v167
    %192 = vmatpush.bf16.msra.mxu0 %v165
    %193 = vmatpush.bf16.msra.mxu0 %v163
    %194 = vmatpush.bf16.msra.mxu0 %v161
    %195 = vmatpush.bf16.msra.mxu0 %v159
    %196 = vmatpush.bf16.msra.mxu0 %v157
    %197 = vmatmul.bf16.gmra.mxu0 %v83
    %v198 = vpop.f32.mrf.mxu0
    %v199 = vadd.f32 %v105, %v198
    %v200 = vpop.f32.mrf.mxu0
    %v201 = vadd.f32 %v105, %v200
    %202 = vmatmul.bf16.gmra.mxu0 %v84
    %v203 = vpop.f32.mrf.mxu0
    %v204 = vadd.f32 %v105, %v203
    %v205 = vpop.f32.mrf.mxu0
    %v206 = vadd.f32 %v105, %v205
    %207 = vmatmul.bf16.gmra.mxu0 %v85
    %v208 = vpop.f32.mrf.mxu0
    %v209 = vadd.f32 %v105, %v208
    %v210 = vpop.f32.mrf.mxu0
    %v211 = vadd.f32 %v105, %v210
    %212 = vmatmul.bf16.gmra.mxu0 %v86
    %v213 = vpop.f32.mrf.mxu0
    %v214 = vadd.f32 %v105, %v213
    %v215 = vpop.f32.mrf.mxu0
    %v216 = vadd.f32 %v105, %v215
    %217 = vdwg.mxu0
    %218 = vmatpush.bf16.msra.mxu0 %v172
    %219 = vmatpush.bf16.msra.mxu0 %v170
    %220 = vmatpush.bf16.msra.mxu0 %v168
    %221 = vmatpush.bf16.msra.mxu0 %v166
    %222 = vmatpush.bf16.msra.mxu0 %v164
    %223 = vmatpush.bf16.msra.mxu0 %v162
    %224 = vmatpush.bf16.msra.mxu0 %v160
    %225 = vmatpush.bf16.msra.mxu0 %v158
    %226 = vmatmul.bf16.gmra.mxu0 %v83
    %v227 = vpop.f32.mrf.mxu0
    %v228 = vadd.f32 %v106, %v227
    %v229 = vpop.f32.mrf.mxu0
    %v230 = vadd.f32 %v106, %v229
    %231 = vmatmul.bf16.gmra.mxu0 %v84
    %v232 = vpop.f32.mrf.mxu0
    %v233 = vadd.f32 %v106, %v232
    %v234 = vpop.f32.mrf.mxu0
    %v235 = vadd.f32 %v106, %v234
    %236 = vmatmul.bf16.gmra.mxu0 %v85
    %v237 = vpop.f32.mrf.mxu0
    %v238 = vadd.f32 %v106, %v237
    %v239 = vpop.f32.mrf.mxu0
    %v240 = vadd.f32 %v106, %v239
    %241 = vmatmul.bf16.gmra.mxu0 %v86
    %v242 = vpop.f32.mrf.mxu0
    %v243 = vadd.f32 %v106, %v242
    %v244 = vpop.f32.mrf.mxu0
    %v245 = vadd.f32 %v106, %v244
    %246 = vdwg.mxu0
    %v247 = vmax.f32 %v199, 0.0
    %v248 = vmax.f32 %v228, 0.0
    %v249 = vmax.f32 %v201, 0.0
    %v250 = vmax.f32 %v230, 0.0
    %v251 = vmax.f32 %v204, 0.0
    %v252 = vmax.f32 %v233, 0.0
    %v253 = vmax.f32 %v206, 0.0
    %v254 = vmax.f32 %v235, 0.0
    %v255 = vmax.f32 %v209, 0.0
    %v256 = vmax.f32 %v238, 0.0
    %v257 = vmax.f32 %v211, 0.0
    %v258 = vmax.f32 %v240, 0.0
    %v259 = vmax.f32 %v214, 0.0
    %v260 = vmax.f32 %v243, 0.0
    %v261 = vmax.f32 %v216, 0.0
    %v262 = vmax.f32 %v245, 0.0
    %v263 = vpack.c.bf16 %v249, %v247
    %v264 = vpack.c.bf16 %v250, %v248
    %v265 = vpack.c.bf16 %v253, %v251
    %v266 = vpack.c.bf16 %v254, %v252
    %v267 = vpack.c.bf16 %v257, %v255
    %v268 = vpack.c.bf16 %v258, %v256
    %v269 = vpack.c.bf16 %v261, %v259
    %v270 = vpack.c.bf16 %v262, %v260
    %v271 = vld [vmem:[#allocation8] sm:$0xf]
    %v272 = vld [vmem:[#allocation8 + $0x4] sm:$0xf]
    %v273 = vld [vmem:[#allocation8 + $0x8] sm:$0xf]
    %v274 = vld [vmem:[#allocation8 + $0xc] sm:$0xf]
    %v275 = vld [vmem:[#allocation8 + $0x10] sm:$0xf]
    %v276 = vld [vmem:[#allocation8 + $0x14] sm:$0xf]
    %v277 = vld [vmem:[#allocation8 + $0x18] sm:$0xf]
    %v278 = vld [vmem:[#allocation8 + $0x1c] sm:$0xf]
    %v279 = vld [vmem:[#allocation8 + $0x20] sm:$0xf]
    %v280 = vld [vmem:[#allocation8 + $0x24] sm:$0xf]
    %v281 = vld [vmem:[#allocation8 + $0x28] sm:$0xf]
    %v282 = vld [vmem:[#allocation8 + $0x2c] sm:$0xf]
    %v283 = vld [vmem:[#allocation8 + $0x30] sm:$0xf]
    %v284 = vld [vmem:[#allocation8 + $0x34] sm:$0xf]
    %v285 = vld [vmem:[#allocation8 + $0x38] sm:$0xf]
    %v286 = vld [vmem:[#allocation8 + $0x3c] sm:$0xf]
    %v287 = vld [vmem:[#allocation8 + $0x40] sm:$0xf]
    %v288 = vld [vmem:[#allocation8 + $0x44] sm:$0xf]
    %v289 = vld [vmem:[#allocation8 + $0x48] sm:$0xf]
    %v290 = vld [vmem:[#allocation8 + $0x4c] sm:$0xf]
    %v291 = vld [vmem:[#allocation8 + $0x50] sm:$0xf]
    %v292 = vld [vmem:[#allocation8 + $0x54] sm:$0xf]
    %v293 = vld [vmem:[#allocation8 + $0x58] sm:$0xf]
    %v294 = vld [vmem:[#allocation8 + $0x5c] sm:$0xf]
    %v295 = vld [vmem:[#allocation8 + $0x60] sm:$0xf]
    %v296 = vld [vmem:[#allocation8 + $0x64] sm:$0xf]
    %v297 = vld [vmem:[#allocation8 + $0x68] sm:$0xf]
    %v298 = vld [vmem:[#allocation8 + $0x6c] sm:$0xf]
    %v299 = vld [vmem:[#allocation8 + $0x70] sm:$0xf]
    %v300 = vld [vmem:[#allocation8 + $0x74] sm:$0xf]
    %v301 = vld [vmem:[#allocation8 + $0x78] sm:$0xf]
    %v302 = vld [vmem:[#allocation8 + $0x7c] sm:$0xf]
    %v303 = vld [vmem:[%s4] sm:$0x1]
    %v305 = vperm.slane %v303, 0
    %v339 = vunpack.c.l.b16 %v271
    %v340 = vunpack.c.l.b16 %v272
    %v341 = vunpack.c.l.b16 %v273
    %v342 = vunpack.c.l.b16 %v274
    %v343 = vunpack.c.l.b16 %v275
    %v344 = vunpack.c.l.b16 %v276
    %v345 = vunpack.c.l.b16 %v277
    %v346 = vunpack.c.l.b16 %v278
    %v347 = vunpack.c.l.b16 %v279
    %v348 = vunpack.c.l.b16 %v280
    %v349 = vunpack.c.l.b16 %v281
    %v350 = vunpack.c.l.b16 %v282
    %v351 = vunpack.c.l.b16 %v283
    %v352 = vunpack.c.l.b16 %v284
    %v353 = vunpack.c.l.b16 %v285
    %v354 = vunpack.c.l.b16 %v286
    %v355 = vunpack.c.l.b16 %v287
    %v356 = vunpack.c.l.b16 %v288
    %v357 = vunpack.c.l.b16 %v289
    %v358 = vunpack.c.l.b16 %v290
    %v359 = vunpack.c.l.b16 %v291
    %v360 = vunpack.c.l.b16 %v292
    %v361 = vunpack.c.l.b16 %v293
    %v362 = vunpack.c.l.b16 %v294
    %v363 = vunpack.c.l.b16 %v295
    %v364 = vunpack.c.l.b16 %v296
    %v365 = vunpack.c.l.b16 %v297
    %v366 = vunpack.c.l.b16 %v298
    %v367 = vunpack.c.l.b16 %v299
    %v368 = vunpack.c.l.b16 %v300
    %v369 = vunpack.c.l.b16 %v301
    %v370 = vunpack.c.l.b16 %v302
    %v371 = vpack.c.b16 %v340, %v339
    %v372 = vpack.c.b16 %v342, %v341
    %v373 = vpack.c.b16 %v344, %v343
    %v374 = vpack.c.b16 %v346, %v345
    %v375 = vpack.c.b16 %v348, %v347
    %v376 = vpack.c.b16 %v350, %v349
    %v377 = vpack.c.b16 %v352, %v351
    %v378 = vpack.c.b16 %v354, %v353
    %v379 = vpack.c.b16 %v356, %v355
    %v380 = vpack.c.b16 %v358, %v357
    %v381 = vpack.c.b16 %v360, %v359
    %v382 = vpack.c.b16 %v362, %v361
    %v383 = vpack.c.b16 %v364, %v363
    %v384 = vpack.c.b16 %v366, %v365
    %v385 = vpack.c.b16 %v368, %v367
    %v386 = vpack.c.b16 %v370, %v369
    %403 = vmatpush.bf16.msra.mxu0 %v378
    %404 = vmatpush.bf16.msra.mxu0 %v377
    %405 = vmatpush.bf16.msra.mxu0 %v376
    %406 = vmatpush.bf16.msra.mxu0 %v375
    %407 = vmatpush.bf16.msra.mxu0 %v374
    %408 = vmatpush.bf16.msra.mxu0 %v373
    %409 = vmatpush.bf16.msra.mxu0 %v372
    %410 = vmatpush.bf16.msra.mxu0 %v371
    %411 = vmatmul.bf16.gmra.mxu0 %v263
    %v412 = vpop.f32.mrf.mxu0
    %v413 = vadd.f32 %v305, %v412
    %v414 = vpop.f32.mrf.mxu0
    %v415 = vadd.f32 %v305, %v414
    %416 = vmatmul.bf16.gmra.mxu0 %v265
    %v417 = vpop.f32.mrf.mxu0
    %v418 = vadd.f32 %v305, %v417
    %v419 = vpop.f32.mrf.mxu0
    %v420 = vadd.f32 %v305, %v419
    %421 = vmatmul.bf16.gmra.mxu0 %v267
    %v422 = vpop.f32.mrf.mxu0
    %v423 = vadd.f32 %v305, %v422
    %v424 = vpop.f32.mrf.mxu0
    %v425 = vadd.f32 %v305, %v424
    %426 = vmatmul.bf16.gmra.mxu0 %v269
    %v427 = vpop.f32.mrf.mxu0
    %v428 = vadd.f32 %v305, %v427
    %v429 = vpop.f32.mrf.mxu0
    %v430 = vadd.f32 %v305, %v429
    %431 = vdwg.mxu0
    %432 = vmatpush.bf16.msra.mxu0 %v386
    %433 = vmatpush.bf16.msra.mxu0 %v385
    %434 = vmatpush.bf16.msra.mxu0 %v384
    %435 = vmatpush.bf16.msra.mxu0 %v383
    %436 = vmatpush.bf16.msra.mxu0 %v382
    %437 = vmatpush.bf16.msra.mxu0 %v381
    %438 = vmatpush.bf16.msra.mxu0 %v380
    %439 = vmatpush.bf16.msra.mxu0 %v379
    %440 = vmatmul.bf16.gmra.mxu0 %v264
    %v441 = vpop.f32.mrf.mxu0
    %v442 = vadd.f32 %v413, %v441
    %v443 = vpop.f32.mrf.mxu0
    %v444 = vadd.f32 %v415, %v443
    %445 = vmatmul.bf16.gmra.mxu0 %v266
    %v446 = vpop.f32.mrf.mxu0
    %v447 = vadd.f32 %v418, %v446
    %v448 = vpop.f32.mrf.mxu0
    %v449 = vadd.f32 %v420, %v448
    %450 = vmatmul.bf16.gmra.mxu0 %v268
    %v451 = vpop.f32.mrf.mxu0
    %v452 = vadd.f32 %v423, %v451
    %v453 = vpop.f32.mrf.mxu0
    %v454 = vadd.f32 %v425, %v453
    %455 = vmatmul.bf16.gmra.mxu0 %v270
    %v456 = vpop.f32.mrf.mxu0
    %v457 = vadd.f32 %v428, %v456
    %v458 = vpop.f32.mrf.mxu0
    %v459 = vadd.f32 %v430, %v458
    %460 = vdwg.mxu0
    %v461 = vmax.f32 %v442, 0.0
    %v462 = vmax.f32 %v444, 0.0
    %v463 = vmax.f32 %v447, 0.0
    %v464 = vmax.f32 %v449, 0.0
    %v465 = vmax.f32 %v452, 0.0
    %v466 = vmax.f32 %v454, 0.0
    %v467 = vmax.f32 %v457, 0.0
    %v468 = vmax.f32 %v459, 0.0
    %v469 = vld [vmem:[%s5] sm:$0x1]
    %v471 = vperm.slane %v469, 0
    %v473 = vmul.f32 %v461, %v471
    %v474 = vmul.f32 %v462, %v471
    %v475 = vmul.f32 %v463, %v471
    %v476 = vmul.f32 %v464, %v471
    %v477 = vmul.f32 %v465, %v471
    %v478 = vmul.f32 %v466, %v471
    %v479 = vmul.f32 %v467, %v471
    %v480 = vmul.f32 %v468, %v471
    %481 = vadd.xlane.f32.xlu0 %v473
    %v482 = vpop.xlane.xlu0 %481
    %483 = vadd.xlane.f32.xlu0 %v474
    %v484 = vpop.xlane.xlu0 %483
    %485 = vadd.xlane.f32.xlu0 %v475
    %v486 = vpop.xlane.xlu0 %485
    %487 = vadd.xlane.f32.xlu0 %v476
    %v488 = vpop.xlane.xlu0 %487
    %489 = vadd.xlane.f32.xlu0 %v477
    %v490 = vpop.xlane.xlu0 %489
    %491 = vadd.xlane.f32.xlu0 %v478
    %v492 = vpop.xlane.xlu0 %491
    %493 = vadd.xlane.f32.xlu0 %v479
    %v494 = vpop.xlane.xlu0 %493
    %495 = vadd.xlane.f32.xlu0 %v480
    %v496 = vpop.xlane.xlu0 %495
    %s497 = sld [smem:[#allocation2]]
    %v498 = vstv %s497
    %v499 = vadd.f32 %v482, %v498
    %v500 = vadd.f32 %v484, %v498
    %v501 = vadd.f32 %v486, %v498
    %v502 = vadd.f32 %v488, %v498
    %v503 = vadd.f32 %v490, %v498
    %v504 = vadd.f32 %v492, %v498
    %v505 = vadd.f32 %v494, %v498
    %v506 = vadd.f32 %v496, %v498
    %v507 = vmul.f32 %v75, %v499
    %v508 = vmul.f32 %v76, %v500
    %v509 = vmul.f32 %v77, %v501
    %v510 = vmul.f32 %v78, %v502
    %v511 = vmul.f32 %v79, %v503
    %v512 = vmul.f32 %v80, %v504
    %v513 = vmul.f32 %v81, %v505
    %v514 = vmul.f32 %v82, %v506
    %515 = vst [vmem:[#allocation9] sm:$0xff] %v507
    %516 = vst [vmem:[#allocation9 + $0x8] sm:$0xff] %v508
    %517 = vst [vmem:[#allocation9 + $0x10] sm:$0xff] %v509
    %518 = vst [vmem:[#allocation9 + $0x18] sm:$0xff] %v510
    %519 = vst [vmem:[#allocation9 + $0x20] sm:$0xff] %v511
    %520 = vst [vmem:[#allocation9 + $0x28] sm:$0xff] %v512
    %521 = vst [vmem:[#allocation9 + $0x30] sm:$0xff] %v513
    %522 = vst [vmem:[#allocation9 + $0x38] sm:$0xff] %v514
    // Predicated region
    $region42: #{tpu_custom_call.1} parent=1 // pred_check
      _
    $region43: #{tpu_custom_call.1} parent=1 // pred_check_branch
      %524 = sbr.rel (0) target = $region45
    $region44: #{tpu_custom_call.1} parent=1 // pred_region
      %526 = vsyncadd [#allocation5], 0
      %s527 = sshll.u32 [#allocation9], 4
      %s528 = int_to_ptr.vmem [resolvable:$true] %s527
      %s529 = sshll.u32 %s7, 4
      %s530 = int_to_ptr.hbm [resolvable:$true] %s529
      %535 = dma.vmem_to_hbm [thread:$0]  %s528, 1024, %s530, [#allocation5], 128, 128, 8
    $region45: #{tpu_custom_call.1} parent=1 // pred_fallthru
      _
    // Predicated region
    $region46: #{tpu_custom_call.1} parent=1 // pred_check
      _
    $region47: #{tpu_custom_call.1} parent=1 // pred_check_branch
      %537 = sbr.rel (0) target = $region49
    $region48: #{tpu_custom_call.1} parent=1 // pred_region
      %539 = dma.done [#allocation5], 1024
    $region49: #{tpu_custom_call.1} parent=1 // pred_fallthru
      _
    %540 = vsyncpa [#allocation4], 1
    %541 = vsyncpa [#allocation7], 1
    %542 = vsyncpa [#allocation5], 1

</llo_original>
